<compile_context>
chip_gen: v7x
topology: tpu7x:2x2x1
jax: 0.10.0
libtpu: 0.0.40
codegen_flags: <defaults>
</compile_context>

<pallas_src>
import functools
import math

import jax
import jax.numpy as jnp
from jax.experimental import pallas as pl
from jax.experimental.pallas import tpu as pltpu


_SQRT_2_OVER_PI = math.sqrt(2.0 / math.pi)


def _gelu_tanh(x):
    # exact match of torch.nn.functional.gelu(x, approximate='tanh')
    return 0.5 * x * (1.0 + jnp.tanh(_SQRT_2_OVER_PI * (x + 0.044715 * x * x * x)))


def _round_up(x, m):
    return (x + m - 1) // m * m


def _physical_vmem_bytes():
    try:
        return int(pltpu.get_tpu_info().vmem_capacity_bytes)
    except Exception:
        # conservative fallback if the query is unavailable in this JAX build
        return 128 * 1024 * 1024


def _chip_tile_prefs():
    """(ti_pref, tm_pref, vmem_fraction, two_core_hint) per VMEM generation.

    128 MiB chips (v5e/v6e): ti<=1024, spend VMEM on tm=1024 (past the HBM
    knee on both).  64 MiB chips (v7x-class): ti=512, tm=512 (~38 MiB with
    H=3072 bf16, balanced DMA vs MXU), higher vmem fraction, 2 TCs/chip.
    """
    cap_mib = _physical_vmem_bytes() >> 20
    if cap_mib >= 112:
        return 1024, 1024, 0.75, False
    return 512, 512, 0.85, True


def _sublane(dtype):
    # rows per sublane pack: 8 for f32, 16 for bf16, 32 for int8/fp8
    return max(8, 32 // jnp.dtype(dtype).itemsize)


def _pick_ti(inter):
    """Largest lane-aligned I-tile that divides I, sized for this chip."""
    preferred, _, _, _ = _chip_tile_prefs()
    for cand in (preferred, 1024, 512, 256, 128):
        if cand <= inter and inter % cand == 0:
            return cand
    return inter  # tiny / awkward I: take it whole


def prepare_gemma_mlp_weights(w_gate, w_up, w_down, *, ti=None, param_dtype=None):
    """One-time weight prep (model init, NOT per forward call).

    Inputs are PyTorch-layout ([out, in]) Linear weights.
    Returns:
      wgu : (nk, H, 2*ti)  fused gate|up, one *contiguous* slab per I-tile k
                           (slab k = [gate cols k*ti:(k+1)*ti | up cols ...],
                            already transposed to [in, out]).
      wd_t: (I, H)         down_proj weight transposed to [in, out].
      ti  : the I-tile size baked into the fused layout.

    For production use pass param_dtype=jnp.bfloat16 (f32 weights halve MXU
    throughput and double the weight HBM stream, which is the bound resource).
    """
    inter, h = w_gate.shape
    assert w_up.shape == (inter, h)
    assert w_down.shape == (h, inter)
    if param_dtype is not None:
        w_gate = w_gate.astype(param_dtype)
        w_up = w_up.astype(param_dtype)
        w_down = w_down.astype(param_dtype)
    if ti is None:
        ti = _pick_ti(inter)
    assert inter % ti == 0, "intermediate_size must be divisible by ti"
    nk = inter // ti

    wg_t = w_gate.T.reshape(h, nk, ti)   # (H, nk, ti)
    wu_t = w_up.T.reshape(h, nk, ti)     # (H, nk, ti)
    # (nk, H, 2*ti): each k-slab is contiguous in HBM -> one linear DMA / step
    wgu = jnp.concatenate([wg_t, wu_t], axis=2).transpose(1, 0, 2)
    wd_t = w_down.T                       # (I, H)
    return wgu, wd_t, ti


def gemma_mlp_kernel(x_ref, wgu_ref, wd_ref, o_ref, *scratch, ti, nk):
    # x_ref:   (tm, H)        tile of flattened tokens
    # wgu_ref: (1, H, 2*ti)   contiguous fused [gate | up] slab for I-slice k
    # wd_ref:  (ti, H)        down_proj weight tile ([in, out] layout)
    # o_ref:   (tm, H)        output tile (resident across the I axis)
    # scratch: ((tm, H) f32 accumulator,) iff nk > 1
    k = pl.program_id(1)

    x = x_ref[...]
    # single fused MXU push computes both gate and up for this I-slice
    gu = jnp.dot(x, wgu_ref[0], preferred_element_type=jnp.float32)
    gate = gu[:, :ti]
    up = gu[:, ti:]
    # keep z in the compute dtype (bf16 when x is bf16) for the down matmul
    z = (_gelu_tanh(gate) * up).astype(x_ref.dtype)
    partial = jnp.dot(z, wd_ref[...], preferred_element_type=jnp.float32)

    if nk == 1:
        o_ref[...] = partial.astype(o_ref.dtype)
    else:
        acc_ref = scratch[0]

        @pl.when(k == 0)
        def _():
            acc_ref[...] = partial            # no zero-fill + add

        @pl.when(jnp.logical_and(k > 0, k < nk - 1))
        def _():
            acc_ref[...] += partial

        @pl.when(k == nk - 1)
        def _():
            # fuse final add with cast+store (no store-then-copy)
            o_ref[...] = (acc_ref[...] + partial).astype(o_ref.dtype)


def gemma_mlp(x, wgu, wd_t, *, ti, tm=None, vmem_limit_bytes=None):
    """x: [batch, seq, hidden]; (wgu, wd_t, ti) from prepare_gemma_mlp_weights."""
    b, s, h = x.shape
    inter = wd_t.shape[0]
    assert inter % ti == 0
    nk = inter // ti
    assert wgu.shape == (nk, h, 2 * ti)
    assert wd_t.shape == (inter, h)

    _, tm_pref, vmem_frac, two_core = _chip_tile_prefs()
    if tm is None:
        tm = tm_pref

    compute_dtype = wgu.dtype
    out_dtype = x.dtype
    m = b * s
    x2d = x.reshape(m, h)
    if x2d.dtype != compute_dtype:
        x2d = x2d.astype(compute_dtype)

    # Row tile: big enough to feed the MXU / amortize the weight stream,
    # clamped for small inputs and aligned to the sublane pack of the compute
    # dtype (16 for bf16, 8 for f32) so no masked/relayout paths are hit.
    sub = _sublane(compute_dtype)
    tm = _round_up(min(tm, _round_up(m, sub)), sub)
    padded_m = _round_up(m, tm)

    # Megacore (2-TC) chips: a single row tile leaves one core idle; split the
    # row axis in two whenever M permits (decode / small-batch case).
    if two_core and padded_m // tm == 1 and m > sub:
        tm_half = _round_up((m + 1) // 2, sub)
        if tm_half < tm:
            tm = tm_half
            padded_m = _round_up(m, tm)

    if padded_m != m:
        x2d = jnp.pad(x2d, ((0, padded_m - m), (0, 0)))

    if vmem_limit_bytes is None:
        vmem_limit_bytes = int(_physical_vmem_bytes() * vmem_frac)

    n_row_tiles = padded_m // tm
    w_bytes = jnp.dtype(compute_dtype).itemsize
    a_bytes = jnp.dtype(out_dtype).itemsize
    cost = pl.CostEstimate(
        flops=6 * m * h * inter,
        transcendentals=m * inter,
        # weights are re-streamed once per row tile
        bytes_accessed=n_row_tiles * 3 * h * inter * w_bytes + 2 * m * h * a_bytes,
    )

    kernel = functools.partial(gemma_mlp_kernel, ti=ti, nk=nk)
    scratch_shapes = [pltpu.VMEM((tm, h), jnp.float32)] if nk > 1 else []

    out2d = pl.pallas_call(
        kernel,
        out_shape=jax.ShapeDtypeStruct((padded_m, h), out_dtype),
        grid_spec=pltpu.PrefetchScalarGridSpec(
            num_scalar_prefetch=0,
            grid=(n_row_tiles, nk),  # rows parallel, I-reduction innermost
            in_specs=[
                pl.BlockSpec((tm, h), lambda i, k: (i, 0)),            # x tile
                pl.BlockSpec((1, h, 2 * ti), lambda i, k: (k, 0, 0)),  # fused gate|up slab
                pl.BlockSpec((ti, h), lambda i, k: (k, 0)),            # down tile
            ],
            out_specs=pl.BlockSpec((tm, h), lambda i, k: (i, 0)),
            scratch_shapes=scratch_shapes,
        ),
        compiler_params=pltpu.CompilerParams(
            dimension_semantics=("parallel", "arbitrary"),
            vmem_limit_bytes=vmem_limit_bytes,
        ),
        cost_estimate=cost,
    )(x2d, wgu, wd_t)

    if padded_m != m:
        out2d = out2d[:m]
    return out2d.reshape(b, s, h)


def gemma_mlp_ref(x, w_gate, w_up, w_down):
    gate = jnp.einsum("bsh,ih->bsi", x, w_gate)
    up = jnp.einsum("bsh,ih->bsi", x, w_up)
    return jnp.einsum("bsi,hi->bsh", _gelu_tanh(gate) * up, w_down)


if __name__ == "__main__":
    key = jax.random.PRNGKey(0)
    kx, kg, ku, kd = jax.random.split(key, 4)

    # small shapes; seq=9 exercises the M-padding path, ti=128 (< I) exercises
    # the I-reduction / accumulator path.
    batch, seq, hidden, intermediate = 2, 9, 32, 256

    x = jax.random.normal(kx, (batch, seq, hidden), dtype=jnp.float32)
    # deterministic "Linear" weights in PyTorch [out, in] layout
    w_gate = jax.random.normal(kg, (intermediate, hidden), jnp.float32) * 0.05
    w_up = jax.random.normal(ku, (intermediate, hidden), jnp.float32) * 0.05
    w_down = jax.random.normal(kd, (hidden, intermediate), jnp.float32) * 0.05

    # --- test 1: f32 path (tight tolerance) -------------------------------
    wgu, wd_t, ti = prepare_gemma_mlp_weights(
        w_gate, w_up, w_down, ti=128, param_dtype=jnp.float32)
    out = jax.block_until_ready(gemma_mlp(x, wgu, wd_t, ti=ti))
    ref = gemma_mlp_ref(x, w_gate, w_up, w_down)
    assert out.shape == (batch, seq, hidden)
    assert jnp.allclose(out, ref, atol=1e-4, rtol=1e-4), "f32 mismatch vs reference"

    # --- test 2: bf16 params + activations (production path, M%16 != 0) ---
    x_bf = x.astype(jnp.bfloat16)
    wgu_b, wd_b, ti_b = prepare_gemma_mlp_weights(
        w_gate, w_up, w_down, ti=128, param_dtype=jnp.bfloat16)
    out_b = jax.block_until_ready(gemma_mlp(x_bf, wgu_b, wd_b, ti=ti_b))
    ref_b = gemma_mlp_ref(
        x_bf.astype(jnp.float32),
        w_gate.astype(jnp.bfloat16).astype(jnp.float32),
        w_up.astype(jnp.bfloat16).astype(jnp.float32),
        w_down.astype(jnp.bfloat16).astype(jnp.float32))
    assert out_b.shape == (batch, seq, hidden)
    assert jnp.allclose(out_b.astype(jnp.float32), ref_b, atol=5e-2, rtol=5e-2), \
        "bf16 mismatch vs reference"

    print("KERNEL_OK")
</pallas_src>

<mosaic_0001>
module attributes {stable_mosaic.version = 11 : i64} {
  func.func @gemma_mlp_kernel(%arg0: i32, %arg1: i32, %arg2: memref<24x32xf32, #tpu.memory_space<vmem>>, %arg3: memref<1x32x256xf32, #tpu.memory_space<vmem>>, %arg4: memref<128x32xf32, #tpu.memory_space<vmem>>, %arg5: memref<24x32xf32, #tpu.memory_space<vmem>>, %arg6: memref<24x32xf32, #tpu.memory_space<vmem>>) attributes {dimension_semantics = [#tpu.dimension_semantics<parallel>, #tpu.dimension_semantics<arbitrary>], iteration_bounds = array<i64: 1, 2>, scalar_prefetch = 0 : i64, scratch_operands = 1 : i64, tpu.core_type = #tpu.core_type<tc>, window_params = [{transform_indices = @transform_0, window_bounds = array<i64: 24, 32>}, {transform_indices = @transform_1, window_bounds = array<i64: 1, 32, 256>}, {transform_indices = @transform_2, window_bounds = array<i64: 128, 32>}, {transform_indices = @transform_3, window_bounds = array<i64: 24, 32>}]} {
    %c0 = arith.constant 0 : index
    %c0_0 = arith.constant 0 : index
    %0 = vector.load %arg2[%c0, %c0_0] : memref<24x32xf32, #tpu.memory_space<vmem>>, vector<24x32xf32>
    %c0_1 = arith.constant 0 : index
    %c0_2 = arith.constant 0 : index
    %c0_3 = arith.constant 0 : index
    %1 = vector.load %arg3[%c0_1, %c0_2, %c0_3] : memref<1x32x256xf32, #tpu.memory_space<vmem>>, vector<1x32x256xf32>
    %2 = vector.shape_cast %1 : vector<1x32x256xf32> to vector<32x256xf32>
    %cst = arith.constant dense<0.000000e+00> : vector<24x256xf32>
    %3 = tpu.matmul %0, %2, %cst {dimension_numbers = #tpu.dot_dimension_numbers<[1], [0], [0], [1], [0, 0, 1, 1], [], []>} : vector<24x32xf32>, vector<32x256xf32>, vector<24x256xf32> -> vector<24x256xf32>
    %4 = vector.extract_strided_slice %3 {offsets = [0, 0], sizes = [24, 128], strides = [1, 1]} : vector<24x256xf32> to vector<24x128xf32>
    %5 = vector.extract_strided_slice %3 {offsets = [0, 128], sizes = [24, 128], strides = [1, 1]} : vector<24x256xf32> to vector<24x128xf32>
    %cst_4 = arith.constant 5.000000e-01 : f32
    %6 = vector.broadcast %cst_4 : f32 to vector<24x128xf32>
    %7 = arith.mulf %6, %4 : vector<24x128xf32>
    %cst_5 = arith.constant 4.471500e-02 : f32
    %8 = vector.broadcast %cst_5 : f32 to vector<24x128xf32>
    %9 = arith.mulf %8, %4 : vector<24x128xf32>
    %10 = arith.mulf %9, %4 : vector<24x128xf32>
    %11 = arith.mulf %10, %4 : vector<24x128xf32>
    %12 = arith.addf %4, %11 : vector<24x128xf32>
    %cst_6 = arith.constant 0.797884583 : f32
    %13 = vector.broadcast %cst_6 : f32 to vector<24x128xf32>
    %14 = arith.mulf %13, %12 : vector<24x128xf32>
    %15 = math.tanh %14 : vector<24x128xf32>
    %cst_7 = arith.constant 1.000000e+00 : f32
    %16 = vector.broadcast %cst_7 : f32 to vector<24x128xf32>
    %17 = arith.addf %16, %15 : vector<24x128xf32>
    %18 = arith.mulf %7, %17 : vector<24x128xf32>
    %19 = arith.mulf %18, %5 : vector<24x128xf32>
    %c0_8 = arith.constant 0 : index
    %c0_9 = arith.constant 0 : index
    %20 = vector.load %arg4[%c0_8, %c0_9] : memref<128x32xf32, #tpu.memory_space<vmem>>, vector<128x32xf32>
    %cst_10 = arith.constant dense<0.000000e+00> : vector<24x32xf32>
    %21 = tpu.matmul %19, %20, %cst_10 {dimension_numbers = #tpu.dot_dimension_numbers<[1], [0], [0], [1], [0, 0, 1, 1], [], []>} : vector<24x128xf32>, vector<128x32xf32>, vector<24x32xf32> -> vector<24x32xf32>
    %c0_i32 = arith.constant 0 : i32
    %22 = arith.cmpi eq, %arg1, %c0_i32 : i32
    %23 = arith.extui %22 : i1 to i32
    %c0_i32_11 = arith.constant 0 : i32
    %24 = arith.cmpi ne, %23, %c0_i32_11 : i32
    scf.if %24 {
      %c0_16 = arith.constant 0 : index
      %c0_17 = arith.constant 0 : index
      %33 = vector.load %arg6[%c0_16, %c0_17] : memref<24x32xf32, #tpu.memory_space<vmem>>, vector<24x32xf32>
      tpu.vector_store %arg6[%c0_16, %c0_17], %21 {strides = array<i32>} : memref<24x32xf32, #tpu.memory_space<vmem>>, vector<24x32xf32>,
    } else {
    }
    %c0_i32_12 = arith.constant 0 : i32
    %25 = arith.cmpi sgt, %arg1, %c0_i32_12 : i32
    %c1_i32 = arith.constant 1 : i32
    %26 = arith.cmpi slt, %arg1, %c1_i32 : i32
    %27 = arith.andi %25, %26 : i1
    %28 = arith.extui %27 : i1 to i32
    %c0_i32_13 = arith.constant 0 : i32
    %29 = arith.cmpi ne, %28, %c0_i32_13 : i32
    scf.if %29 {
      %c0_16 = arith.constant 0 : index
      %c0_17 = arith.constant 0 : index
      %33 = vector.load %arg6[%c0_16, %c0_17] : memref<24x32xf32, #tpu.memory_space<vmem>>, vector<24x32xf32>
      %34 = arith.addf %33, %21 : vector<24x32xf32>
      %c0_18 = arith.constant 0 : index
      %c0_19 = arith.constant 0 : index
      %35 = vector.load %arg6[%c0_18, %c0_19] : memref<24x32xf32, #tpu.memory_space<vmem>>, vector<24x32xf32>
      tpu.vector_store %arg6[%c0_18, %c0_19], %34 {strides = array<i32>} : memref<24x32xf32, #tpu.memory_space<vmem>>, vector<24x32xf32>,
    } else {
    }
    %c1_i32_14 = arith.constant 1 : i32
    %30 = arith.cmpi eq, %arg1, %c1_i32_14 : i32
    %31 = arith.extui %30 : i1 to i32
    %c0_i32_15 = arith.constant 0 : i32
    %32 = arith.cmpi ne, %31, %c0_i32_15 : i32
    scf.if %32 {
      %c0_16 = arith.constant 0 : index
      %c0_17 = arith.constant 0 : index
      %33 = vector.load %arg6[%c0_16, %c0_17] : memref<24x32xf32, #tpu.memory_space<vmem>>, vector<24x32xf32>
      %34 = arith.addf %33, %21 : vector<24x32xf32>
      %c0_18 = arith.constant 0 : index
      %c0_19 = arith.constant 0 : index
      %35 = vector.load %arg5[%c0_18, %c0_19] : memref<24x32xf32, #tpu.memory_space<vmem>>, vector<24x32xf32>
      tpu.vector_store %arg5[%c0_18, %c0_19], %34 {strides = array<i32>} : memref<24x32xf32, #tpu.memory_space<vmem>>, vector<24x32xf32>,
    } else {
    }
    return
  }
  func.func @transform_0(%arg0: i32, %arg1: i32) -> (i32, i32) {
    %c0_i32 = arith.constant 0 : i32
    %c0_i32_0 = arith.constant 0 : i32
    return %arg0, %c0_i32 : i32, i32
  }
  func.func @transform_1(%arg0: i32, %arg1: i32) -> (i32, i32, i32) {
    %c0_i32 = arith.constant 0 : i32
    %c0_i32_0 = arith.constant 0 : i32
    %c0_i32_1 = arith.constant 0 : i32
    return %arg1, %c0_i32, %c0_i32_0 : i32, i32, i32
  }
  func.func @transform_2(%arg0: i32, %arg1: i32) -> (i32, i32) {
    %c0_i32 = arith.constant 0 : i32
    %c0_i32_0 = arith.constant 0 : i32
    return %arg1, %c0_i32 : i32, i32
  }
  func.func @transform_3(%arg0: i32, %arg1: i32) -> (i32, i32) {
    %c0_i32 = arith.constant 0 : i32
    %c0_i32_0 = arith.constant 0 : i32
    return %arg0, %c0_i32 : i32, i32
  }
}

</mosaic_0001>

<llo_original>
// kernel: tpu_custom_call.1
$region0: #{tpu_custom_call.1}
  #allocation0 [shape = 'u32[]', space=smem, size = 0x4, offset = 0x4, fixed_abs, tag = 'smem constant byte address 0x4 - core index']
  #allocation1 [shape = 'u32[144,128]{1,0:T(1,128)}', space=vmem, size = 0x12000, scoped, tag = 'internal scratch']
  #allocation2 [shape = 'f32[24,32]{1,0:T(8,128)}', space=vmem, size = 0x3000, scoped, tag = 'scratch operand']
  %s0 = inlined_call_operand.hbm [shape: f32[24,32], index: 0, kind: input, shape index: {}]
  %s1 = inlined_call_operand.hbm [shape: f32[2,32,256], index: 1, kind: input, shape index: {}]
  %s2 = inlined_call_operand.hbm [shape: f32[256,32], index: 2, kind: input, shape index: {}]
  %s3 = inlined_call_operand.hbm [shape: f32[24,32], index: 3, kind: output, shape index: {}]
  %s4 = sld [smem:[#allocation0]]
  $region69: #{tpu_custom_call.1} parent=0
    _
  %s6 = ssub.s32 1, %s4
  %s7 = scalar_select 0, %s6, %s4
  $region1: #{tpu_custom_call.1} parent=0
    #allocation3 [shape = 'u8[12288]{0}', space=vmem, size = 0x3000, scoped, tag = 'input window, operand 0, single buffered']
    #allocation4 [shape = 's32[2]{0}', space=sflag, size = 0x8, scoped, tag = 'scoped memory for tpu_custom_call.1']
    #allocation5 [shape = 's32[2]{0}', space=sflag, size = 0x8, scoped, tag = 'scoped memory for tpu_custom_call.1']
    #allocation6 [shape = 'u8[65536]{0}', space=vmem, size = 0x10000, scoped, tag = 'input window, operand 1']
    #allocation7 [shape = 's32[2]{0}', space=sflag, size = 0x8, scoped, tag = 'scoped memory for tpu_custom_call.1']
    #allocation8 [shape = 'u8[131072]{0}', space=vmem, size = 0x20000, scoped, tag = 'input window, operand 2']
    #allocation9 [shape = 'u8[12288]{0}', space=vmem, size = 0x3000, scoped, tag = 'output window, operand 0, single buffered']
    %8 = vsyncpa [#allocation4], 0
    %9 = vsyncpa [#allocation7], 0
    %s10 = scalar_lea.sflag [#allocation7], 1
    %11 = vsyncpa %s10, 0
    %12 = vsyncpa [#allocation5], 0
    loop: start=0, step=1, limit=4
    $region2: #{tpu_custom_call.1} parent=1 // loop_pre_header
      _
    $region3: #{tpu_custom_call.1} parent=1 // loop_header
      %s14 = sphi 0, %s18
      %p15 = scmp.ge.s32.totalorder %s14, 4
      %s21 = sphi 0, %s33
      %s22 = sphi 0, %s29
      %s23 = sphi 0, %s21
      %s24 = sphi 0, %s22
      %s25 = sphi 0, %s23
      %s26 = sphi 0, %s24
      %s36 = sphi 0, %s38
      %s39 = sphi 0, %s36
      %s40 = sphi 0, %s39
      %s56 = sphi 0, %s40
      %s62 = sphi 0, %s64
      %s65 = sphi 0, %s62
      %s66 = sphi 0, %s65
      %s82 = sphi 0, %s66
      %s88 = sphi 0, %s90
      %s91 = sphi 0, %s88
      %s92 = sphi 0, %s91
      %s108 = sphi 0, %s92
      %s114 = sphi 0, %s116
      %s117 = sphi 0, %s114
      %s118 = sphi 0, %s117
      %s134 = sphi 0, %s118
    $region4: #{tpu_custom_call.1} parent=1 // loop_header_branch
      %17 = sbr.rel (%p15) target = $region8
    $region5: #{tpu_custom_call.1} parent=1 // loop_body
      %s19 = ssub.s32 %s14, 1
      %s20 = ssub.s32 %s14, 2
      %s27 = sadd.s32 1, %s22
      %p28 = scmp.ge.s32.totalorder %s27, 2
      %s29 = scalar_select %p28, 0, %s27
      %s30 = sadd.s32 1, %s21
      %s31 = scalar_select %p28, %s30, %s21
      %p32 = scmp.ge.s32.totalorder %s31, 1
      %s33 = scalar_select %p32, 0, %s31
      %s34 = ssub.s32 %s21, %s33
      %p35 = scmp.eq.s32.totalorder %s34, 0
      %s37 = sadd.s32 %s36, 1
      %s38 = scalar_select %p35, %s36, %s37
      %p41 = pneg %p35
      %p42 = scmp.eq.s32.totalorder %s14, 1
      %p43 = por %p41, %p42
      %p44 = scmp.ne.s32.totalorder %s36, %s39
      %p45 = scmp.eq.s32.totalorder %s14, 0
      %p46 = por %p44, %p45
      %p47 = scmp.ne.s32.totalorder %s36, %s39
      %p48 = scmp.eq.s32.totalorder %s19, 1
      %p49 = por %p47, %p48
      %p50 = scmp.ne.s32.totalorder %s39, %s40
      %p51 = scmp.eq.s32.totalorder %s19, 0
      %p52 = por %p50, %p51
      %p53 = scmp.ne.s32.totalorder %s39, %s40
      %p54 = scmp.eq.s32.totalorder %s20, 1
      %p55 = por %p53, %p54
      %p57 = scmp.ne.s32.totalorder %s40, %s56
      %p58 = scmp.eq.s32.totalorder %s20, 0
      %p59 = por %p57, %p58
      %s60 = ssub.s32 %s22, %s29
      %p61 = scmp.eq.s32.totalorder %s60, 0
      %s63 = sadd.s32 %s62, 1
      %s64 = scalar_select %p61, %s62, %s63
      %p67 = pneg %p61
      %p68 = scmp.eq.s32.totalorder %s14, 1
      %p69 = por %p67, %p68
      %p70 = scmp.ne.s32.totalorder %s62, %s65
      %p71 = scmp.eq.s32.totalorder %s14, 0
      %p72 = por %p70, %p71
      %p73 = scmp.ne.s32.totalorder %s62, %s65
      %p74 = scmp.eq.s32.totalorder %s19, 1
      %p75 = por %p73, %p74
      %p76 = scmp.ne.s32.totalorder %s65, %s66
      %p77 = scmp.eq.s32.totalorder %s19, 0
      %p78 = por %p76, %p77
      %p79 = scmp.ne.s32.totalorder %s65, %s66
      %p80 = scmp.eq.s32.totalorder %s20, 1
      %p81 = por %p79, %p80
      %p83 = scmp.ne.s32.totalorder %s66, %s82
      %p84 = scmp.eq.s32.totalorder %s20, 0
      %p85 = por %p83, %p84
      %s86 = ssub.s32 %s22, %s29
      %p87 = scmp.eq.s32.totalorder %s86, 0
      %s89 = sadd.s32 %s88, 1
      %s90 = scalar_select %p87, %s88, %s89
      %p93 = pneg %p87
      %p94 = scmp.eq.s32.totalorder %s14, 1
      %p95 = por %p93, %p94
      %p96 = scmp.ne.s32.totalorder %s88, %s91
      %p97 = scmp.eq.s32.totalorder %s14, 0
      %p98 = por %p96, %p97
      %p99 = scmp.ne.s32.totalorder %s88, %s91
      %p100 = scmp.eq.s32.totalorder %s19, 1
      %p101 = por %p99, %p100
      %p102 = scmp.ne.s32.totalorder %s91, %s92
      %p103 = scmp.eq.s32.totalorder %s19, 0
      %p104 = por %p102, %p103
      %p105 = scmp.ne.s32.totalorder %s91, %s92
      %p106 = scmp.eq.s32.totalorder %s20, 1
      %p107 = por %p105, %p106
      %p109 = scmp.ne.s32.totalorder %s92, %s108
      %p110 = scmp.eq.s32.totalorder %s20, 0
      %p111 = por %p109, %p110
      %s112 = ssub.s32 %s21, %s33
      %p113 = scmp.eq.s32.totalorder %s112, 0
      %s115 = sadd.s32 %s114, 1
      %s116 = scalar_select %p113, %s114, %s115
      %p119 = pneg %p113
      %p120 = scmp.eq.s32.totalorder %s14, 1
      %p121 = por %p119, %p120
      %p122 = scmp.ne.s32.totalorder %s114, %s117
      %p123 = scmp.eq.s32.totalorder %s14, 0
      %p124 = por %p122, %p123
      %p125 = scmp.ne.s32.totalorder %s114, %s117
      %p126 = scmp.eq.s32.totalorder %s19, 1
      %p127 = por %p125, %p126
      %p128 = scmp.ne.s32.totalorder %s117, %s118
      %p129 = scmp.eq.s32.totalorder %s19, 0
      %p130 = por %p128, %p129
      %p131 = scmp.ne.s32.totalorder %s117, %s118
      %p132 = scmp.eq.s32.totalorder %s20, 1
      %p133 = por %p131, %p132
      %p135 = scmp.ne.s32.totalorder %s118, %s134
      %p136 = scmp.eq.s32.totalorder %s20, 0
      %p137 = por %p135, %p136
      %p138 = scmp.le.s32.totalorder 1, %s14
      %p139 = scmp.lt.s32.totalorder %s14, 3
      %p140 = pnand %p138, %p139
      %p141 = pneg %p140
      // Predicated region
      $region9: #{tpu_custom_call.1} parent=5 // pred_check
        _
      $region10: #{tpu_custom_call.1} parent=5 // pred_check_branch
        %143 = sbr.rel (%p140) target = $region12
      $region11: #{tpu_custom_call.1} parent=5 // pred_region
        %s144 = ssub.s32 %s14, 1
        // Predicated region
        $region13: #{tpu_custom_call.1} parent=11 // pred_check
          %p145 = pneg %p52
        $region14: #{tpu_custom_call.1} parent=11 // pred_check_branch
          %147 = sbr.rel (%p145) target = $region16
        $region15: #{tpu_custom_call.1} parent=11 // pred_region
          %s148 = smul.u32 3, %s23
          %s150 = ssub.s32 384, 384
          %151 = vsyncadd [#allocation4], %s150
          %s152 = smul.addr %s148, 128
          %s153 = scalar_lea.hbm %s0, %s152
          %s154 = sshll.u32 [#allocation3], 4
          %s155 = int_to_ptr.vmem [resolvable:$true] %s154
          %160 = dma.hbm_to_vmem [thread:$0]  %s153, 384, %s155, [#allocation4], 128, 128, 8
        $region16: #{tpu_custom_call.1} parent=11 // pred_fallthru
          _
      $region12: #{tpu_custom_call.1} parent=5 // pred_fallthru
        _
      %p161 = scmp.lt.s32.totalorder %s14, 2
      // Predicated region
      $region17: #{tpu_custom_call.1} parent=5 // pred_check
        %p162 = pneg %p161
      $region18: #{tpu_custom_call.1} parent=5 // pred_check_branch
        %164 = sbr.rel (%p162) target = $region20
      $region19: #{tpu_custom_call.1} parent=5 // pred_region
        // Predicated region
        $region21: #{tpu_custom_call.1} parent=19 // pred_check
          %p165 = pneg %p72
        $region22: #{tpu_custom_call.1} parent=19 // pred_check_branch
          %167 = sbr.rel (%p165) target = $region24
        $region23: #{tpu_custom_call.1} parent=19 // pred_region
          %s168 = sand.u32 %s14, 1
          %s169 = scalar_lea.sflag [#allocation7], %s168
          %s170 = sand.u32 %s62, 1
          %s171 = smul.addr %s170, 64
          %s172 = scalar_lea.vmem [#allocation6], %s171
          %s174 = ssub.s32 1024, 1024
          %175 = vsyncadd %s169, %s174
          %s176 = smul.addr %s22, 8
          %s177 = smul.addr %s176, 128
          %s178 = scalar_lea.hbm %s1, %s177
          %s179 = sshll.u32 %s172, 4
          %s180 = int_to_ptr.vmem [resolvable:$true] %s179
          %185 = dma.hbm_to_vmem [thread:$0]  %s178, 1024, %s180, %s169, 256, 256, 16
        $region24: #{tpu_custom_call.1} parent=19 // pred_fallthru
          _
        // Predicated region
        $region25: #{tpu_custom_call.1} parent=19 // pred_check
          %p186 = pneg %p98
        $region26: #{tpu_custom_call.1} parent=19 // pred_check_branch
          %188 = sbr.rel (%p186) target = $region28
        $region27: #{tpu_custom_call.1} parent=19 // pred_region
          %s189 = sand.u32 %s14, 1
          %s190 = scalar_lea.sflag [#allocation7], %s189
          %s191 = sand.u32 %s88, 1
          %s192 = smul.addr %s191, 128
          %s193 = scalar_lea.vmem [#allocation8], %s192
          %s194 = smul.u32 16, %s22
          %s196 = ssub.s32 2048, 2048
          %197 = vsyncadd %s190, %s196
          %s198 = smul.addr %s194, 128
          %s199 = scalar_lea.hbm %s2, %s198
          %s200 = sshll.u32 %s193, 4
          %s201 = int_to_ptr.vmem [resolvable:$true] %s200
          %206 = dma.hbm_to_vmem [thread:$0]  %s199, 2048, %s201, %s190, 128, 128, 8
        $region28: #{tpu_custom_call.1} parent=19 // pred_fallthru
          _
      $region20: #{tpu_custom_call.1} parent=5 // pred_fallthru
        _
      %p207 = scmp.le.s32.totalorder 1, %s14
      %p208 = scmp.lt.s32.totalorder %s14, 3
      %p209 = pnand %p207, %p208
      %p210 = pneg %p209
      // Predicated region
      $region29: #{tpu_custom_call.1} parent=5 // pred_check
        _
      $region30: #{tpu_custom_call.1} parent=5 // pred_check_branch
        %212 = sbr.rel (%p209) target = $region32
      $region31: #{tpu_custom_call.1} parent=5 // pred_region
        %s213 = ssub.s32 %s14, 1
        // Predicated region
        $region33: #{tpu_custom_call.1} parent=31 // pred_check
          %p214 = pneg %p52
        $region34: #{tpu_custom_call.1} parent=31 // pred_check_branch
          %216 = sbr.rel (%p214) target = $region36
        $region35: #{tpu_custom_call.1} parent=31 // pred_region
          %217 = dma.done [#allocation4], 384
        $region36: #{tpu_custom_call.1} parent=31 // pred_fallthru
          _
        %s218 = sand.u32 %s19, 1
        %s219 = scalar_lea.sflag [#allocation7], %s218
        %s220 = sand.u32 %s65, 1
        %s221 = smul.addr %s220, 64
        %s222 = scalar_lea.vmem [#allocation6], %s221
        // Predicated region
        $region37: #{tpu_custom_call.1} parent=31 // pred_check
          %p223 = pneg %p78
        $region38: #{tpu_custom_call.1} parent=31 // pred_check_branch
          %225 = sbr.rel (%p223) target = $region40
        $region39: #{tpu_custom_call.1} parent=31 // pred_region
          %226 = dma.done %s219, 1024
        $region40: #{tpu_custom_call.1} parent=31 // pred_fallthru
          _
        %s227 = sand.u32 %s19, 1
        %s228 = scalar_lea.sflag [#allocation7], %s227
        %s229 = sand.u32 %s91, 1
        %s230 = smul.addr %s229, 128
        %s231 = scalar_lea.vmem [#allocation8], %s230
        // Predicated region
        $region41: #{tpu_custom_call.1} parent=31 // pred_check
          %p232 = pneg %p104
        $region42: #{tpu_custom_call.1} parent=31 // pred_check_branch
          %234 = sbr.rel (%p232) target = $region44
        $region43: #{tpu_custom_call.1} parent=31 // pred_region
          %235 = dma.done %s228, 2048
        $region44: #{tpu_custom_call.1} parent=31 // pred_fallthru
          _
        %p236 = pneg %p52
        %p237 = pneg %p49
        %s238 = sand.u32 %s19, 1
        %s239 = scalar_lea.sflag [#allocation7], %s238
        %s240 = sand.u32 %s65, 1
        %s241 = smul.addr %s240, 64
        %s242 = scalar_lea.vmem [#allocation6], %s241
        %p243 = pneg %p78
        %p244 = pneg %p75
        %s245 = sand.u32 %s19, 1
        %s246 = scalar_lea.sflag [#allocation7], %s245
        %s247 = sand.u32 %s91, 1
        %s248 = smul.addr %s247, 128
        %s249 = scalar_lea.vmem [#allocation8], %s248
        %p250 = pneg %p104
        %p251 = pneg %p101
        %p252 = pneg %p130
        %p253 = pneg %p127
        %s254 = smul.u32 3, %s23
        %s255 = smul.u32 16, %s24
        %s256 = smul.u32 3, %s23
        %v257 = vld [vmem:[#allocation3] sm:$0xff]
        %v258 = vld [vmem:[#allocation3 + $0x8] sm:$0xff]
        %v259 = vld [vmem:[#allocation3 + $0x10] sm:$0xff]
        %v260 = vld [vmem:[%s222] sm:$0xff]
        %v261 = vld [vmem:[%s222 + $0x8] sm:$0xff]
        %v262 = vld [vmem:[%s222 + $0x10] sm:$0xff]
        %v263 = vld [vmem:[%s222 + $0x18] sm:$0xff]
        %v264 = vld [vmem:[%s222 + $0x20] sm:$0xff]
        %v265 = vld [vmem:[%s222 + $0x28] sm:$0xff]
        %v266 = vld [vmem:[%s222 + $0x30] sm:$0xff]
        %v267 = vld [vmem:[%s222 + $0x38] sm:$0xff]
        %vm268 = vcmask 261120
        %v270 = vsel %vm268, %v257, 0
        %v273 = vsel %vm268, %v258, 0
        %v276 = vsel %vm268, %v259, 0
        %278 = vmatprep.subr.mxu0 %v261
        %279 = vmatpush1.msra.mxu0 %v260
        %280 = vmatprep.subr.mxu0 %v263
        %281 = vmatpush1.msra.mxu0 %v262
        %282 = vmatprep.subr.mxu0 %v265
        %283 = vmatpush1.msra.mxu0 %v264
        %284 = vmatprep.subr.mxu0 %v267
        %285 = vmatpush1.msra.mxu0 %v266
        %286 = vmatprep.subr.mxu0 0.0
        %287 = vmatpush1.msra.mxu0 0.0
        %288 = vmatprep.subr.mxu0 0.0
        %289 = vmatpush1.msra.mxu0 0.0
        %290 = vmatprep.subr.mxu0 0.0
        %291 = vmatpush1.msra.mxu0 0.0
        %292 = vmatprep.subr.mxu0 0.0
        %293 = vmatpush1.msra.mxu0 0.0
        %294 = vmatprep.subr.mxu0 0.0
        %295 = vmatpush1.msra.mxu0 0.0
        %296 = vmatprep.subr.mxu0 0.0
        %297 = vmatpush1.msra.mxu0 0.0
        %298 = vmatprep.subr.mxu0 0.0
        %299 = vmatpush1.msra.mxu0 0.0
        %300 = vmatprep.subr.mxu0 0.0
        %301 = vmatpush1.msra.mxu0 0.0
        %302 = vmatprep.subr.mxu0 0.0
        %303 = vmatpush1.msra.mxu0 0.0
        %304 = vmatprep.subr.mxu0 0.0
        %305 = vmatpush1.msra.mxu0 0.0
        %306 = vmatprep.subr.mxu0 0.0
        %307 = vmatpush1.msra.mxu0 0.0
        %308 = vmatprep.subr.mxu0 0.0
        %309 = vmatpush1.msra.mxu0 0.0
        %310 = vmatprep.subr.mxu0 0.0
        %311 = vmatpush1.msra.mxu0 0.0
        %312 = vmatprep.subr.mxu0 0.0
        %313 = vmatpush1.msra.mxu0 0.0
        %314 = vmatprep.subr.mxu0 0.0
        %315 = vmatpush1.msra.mxu0 0.0
        %316 = vmatprep.subr.mxu0 0.0
        %317 = vmatpush1.msra.mxu0 0.0
        %318 = vmatprep.subr.mxu0 0.0
        %319 = vmatpush1.msra.mxu0 0.0
        %320 = vmatprep.subr.mxu0 0.0
        %321 = vmatpush1.msra.mxu0 0.0
        %322 = vmatprep.subr.mxu0 0.0
        %323 = vmatpush1.msra.mxu0 0.0
        %324 = vmatprep.subr.mxu0 0.0
        %325 = vmatpush1.msra.mxu0 0.0
        %326 = vmatprep.subr.mxu0 0.0
        %327 = vmatpush1.msra.mxu0 0.0
        %328 = vmatprep.subr.mxu0 0.0
        %329 = vmatpush1.msra.mxu0 0.0
        %330 = vmatprep.subr.mxu0 0.0
        %331 = vmatpush1.msra.mxu0 0.0
        %332 = vmatprep.subr.mxu0 0.0
        %333 = vmatpush1.msra.mxu0 0.0
        %334 = vmatprep.subr.mxu0 0.0
        %335 = vmatpush1.msra.mxu0 0.0
        %336 = vmatprep.subr.mxu0 0.0
        %337 = vmatpush1.msra.mxu0 0.0
        %338 = vmatprep.subr.mxu0 0.0
        %339 = vmatpush1.msra.mxu0 0.0
        %340 = vmatprep.subr.mxu0 0.0
        %341 = vmatpush1.msra.mxu0 0.0
        %342 = vmatprep.mubr.f32.mxu0 0.0
        %343 = vmatmul.mubr.f32.gmra.mrb[0].mxu0 %v270
        %v344 = vpop.f32.mrb[0].mxu0
        %v345 = vadd.f32 0.0, %v344
        %v346 = vpop.f32.mrb[0].mxu0
        %v347 = vadd.f32 0.0, %v346
        %348 = vmatprep.mubr.f32.mxu0 0.0
        %349 = vmatmul.mubr.f32.gmra.mrb[0].mxu0 %v273
        %v350 = vpop.f32.mrb[0].mxu0
        %v351 = vadd.f32 0.0, %v350
        %v352 = vpop.f32.mrb[0].mxu0
        %v353 = vadd.f32 0.0, %v352
        %354 = vmatprep.mubr.f32.mxu0 0.0
        %355 = vmatmul.mubr.f32.gmra.mrb[0].mxu0 %v276
        %v356 = vpop.f32.mrb[0].mxu0
        %v357 = vadd.f32 0.0, %v356
        %v358 = vpop.f32.mrb[0].mxu0
        %v359 = vadd.f32 0.0, %v358
        %360 = vdwg.mxu0
        %v361 = vmul.f32 %v345, 0.5
        %v362 = vmul.f32 %v351, 0.5
        %v363 = vmul.f32 %v357, 0.5
        %v364 = vmul.f32 %v345, 0.044715
        %v365 = vmul.f32 %v351, 0.044715
        %v366 = vmul.f32 %v357, 0.044715
        %v367 = vmul.f32 %v364, %v345
        %v368 = vmul.f32 %v365, %v351
        %v369 = vmul.f32 %v366, %v357
        %v370 = vmul.f32 %v367, %v345
        %v371 = vmul.f32 %v368, %v351
        %v372 = vmul.f32 %v369, %v357
        %v373 = vadd.f32 %v345, %v370
        %v374 = vadd.f32 %v351, %v371
        %v375 = vadd.f32 %v357, %v372
        %v376 = vmul.f32 %v373, 0.7978846
        %v377 = vmul.f32 %v374, 0.7978846
        %v378 = vmul.f32 %v375, 0.7978846
        %v379 = vtanh.pop %v376
        %v380 = vtanh.pop %v377
        %v381 = vtanh.pop %v378
        %v382 = vadd.f32 %v379, 1.0
        %v383 = vadd.f32 %v380, 1.0
        %v384 = vadd.f32 %v381, 1.0
        %v385 = vmul.f32 %v361, %v382
        %v386 = vmul.f32 %v362, %v383
        %v387 = vmul.f32 %v363, %v384
        %v388 = vmul.f32 %v385, %v347
        %v389 = vmul.f32 %v386, %v353
        %v390 = vmul.f32 %v387, %v359
        %v391 = vld [vmem:[%s231] sm:$0xff]
        %v392 = vld [vmem:[%s231 + $0x8] sm:$0xff]
        %v393 = vld [vmem:[%s231 + $0x10] sm:$0xff]
        %v394 = vld [vmem:[%s231 + $0x18] sm:$0xff]
        %v395 = vld [vmem:[%s231 + $0x20] sm:$0xff]
        %v396 = vld [vmem:[%s231 + $0x28] sm:$0xff]
        %v397 = vld [vmem:[%s231 + $0x30] sm:$0xff]
        %v398 = vld [vmem:[%s231 + $0x38] sm:$0xff]
        %v399 = vld [vmem:[%s231 + $0x40] sm:$0xff]
        %v400 = vld [vmem:[%s231 + $0x48] sm:$0xff]
        %v401 = vld [vmem:[%s231 + $0x50] sm:$0xff]
        %v402 = vld [vmem:[%s231 + $0x58] sm:$0xff]
        %v403 = vld [vmem:[%s231 + $0x60] sm:$0xff]
        %v404 = vld [vmem:[%s231 + $0x68] sm:$0xff]
        %v405 = vld [vmem:[%s231 + $0x70] sm:$0xff]
        %v406 = vld [vmem:[%s231 + $0x78] sm:$0xff]
        %407 = vmatprep.subr.mxu0 0.0
        %408 = vmatpush1.msra.mxu0 %v391
        %409 = vmatprep.subr.mxu0 0.0
        %410 = vmatpush1.msra.mxu0 %v392
        %411 = vmatprep.subr.mxu0 0.0
        %412 = vmatpush1.msra.mxu0 %v393
        %413 = vmatprep.subr.mxu0 0.0
        %414 = vmatpush1.msra.mxu0 %v394
        %415 = vmatprep.subr.mxu0 0.0
        %416 = vmatpush1.msra.mxu0 %v395
        %417 = vmatprep.subr.mxu0 0.0
        %418 = vmatpush1.msra.mxu0 %v396
        %419 = vmatprep.subr.mxu0 0.0
        %420 = vmatpush1.msra.mxu0 %v397
        %421 = vmatprep.subr.mxu0 0.0
        %422 = vmatpush1.msra.mxu0 %v398
        %423 = vmatprep.subr.mxu0 0.0
        %424 = vmatpush1.msra.mxu0 %v399
        %425 = vmatprep.subr.mxu0 0.0
        %426 = vmatpush1.msra.mxu0 %v400
        %427 = vmatprep.subr.mxu0 0.0
        %428 = vmatpush1.msra.mxu0 %v401
        %429 = vmatprep.subr.mxu0 0.0
        %430 = vmatpush1.msra.mxu0 %v402
        %431 = vmatprep.subr.mxu0 0.0
        %432 = vmatpush1.msra.mxu0 %v403
        %433 = vmatprep.subr.mxu0 0.0
        %434 = vmatpush1.msra.mxu0 %v404
        %435 = vmatprep.subr.mxu0 0.0
        %436 = vmatpush1.msra.mxu0 %v405
        %437 = vmatprep.subr.mxu0 0.0
        %438 = vmatpush1.msra.mxu0 %v406
        %439 = vmatprep.subr.mxu0 0.0
        %440 = vmatpush1.msra.mxu0 0.0
        %441 = vmatprep.subr.mxu0 0.0
        %442 = vmatpush1.msra.mxu0 0.0
        %443 = vmatprep.subr.mxu0 0.0
        %444 = vmatpush1.msra.mxu0 0.0
        %445 = vmatprep.subr.mxu0 0.0
        %446 = vmatpush1.msra.mxu0 0.0
        %447 = vmatprep.subr.mxu0 0.0
        %448 = vmatpush1.msra.mxu0 0.0
        %449 = vmatprep.subr.mxu0 0.0
        %450 = vmatpush1.msra.mxu0 0.0
        %451 = vmatprep.subr.mxu0 0.0
        %452 = vmatpush1.msra.mxu0 0.0
        %453 = vmatprep.subr.mxu0 0.0
        %454 = vmatpush1.msra.mxu0 0.0
        %455 = vmatprep.subr.mxu0 0.0
        %456 = vmatpush1.msra.mxu0 0.0
        %457 = vmatprep.subr.mxu0 0.0
        %458 = vmatpush1.msra.mxu0 0.0
        %459 = vmatprep.subr.mxu0 0.0
        %460 = vmatpush1.msra.mxu0 0.0
        %461 = vmatprep.subr.mxu0 0.0
        %462 = vmatpush1.msra.mxu0 0.0
        %463 = vmatprep.subr.mxu0 0.0
        %464 = vmatpush1.msra.mxu0 0.0
        %465 = vmatprep.subr.mxu0 0.0
        %466 = vmatpush1.msra.mxu0 0.0
        %467 = vmatprep.subr.mxu0 0.0
        %468 = vmatpush1.msra.mxu0 0.0
        %469 = vmatprep.subr.mxu0 0.0
        %470 = vmatpush1.msra.mxu0 0.0
        %471 = vmatprep.mubr.f32.mxu0 0.0
        %472 = vmatmul.mubr.f32.gmra.mrb[0].mxu0 %v388
        %v473 = vpop.f32.mrb[0].mxu0
        %v474 = vadd.f32 0.0, %v473
        %v475 = vpop.f32.mrb[0].mxu0
        %476 = vmatprep.mubr.f32.mxu0 0.0
        %477 = vmatmul.mubr.f32.gmra.mrb[0].mxu0 %v389
        %v478 = vpop.f32.mrb[0].mxu0
        %v479 = vadd.f32 0.0, %v478
        %v480 = vpop.f32.mrb[0].mxu0
        %481 = vmatprep.mubr.f32.mxu0 0.0
        %482 = vmatmul.mubr.f32.gmra.mrb[0].mxu0 %v390
        %v483 = vpop.f32.mrb[0].mxu0
        %v484 = vadd.f32 0.0, %v483
        %v485 = vpop.f32.mrb[0].mxu0
        %486 = vdwg.mxu0
        %p487 = scmp.eq.s32.totalorder %s24, 0
        // Predicated region
        $region45: #{tpu_custom_call.1} parent=31 // pred_check
          %p488 = pneg %p487
        $region46: #{tpu_custom_call.1} parent=31 // pred_check_branch
          %490 = sbr.rel (%p488) target = $region48
        $region47: #{tpu_custom_call.1} parent=31 // pred_region
          %491 = vst.msk [vmem:[#allocation2] sm:$0xff] %vm268, %v474
          %492 = vst.msk [vmem:[#allocation2 + $0x8] sm:$0xff] %vm268, %v479
          %493 = vst.msk [vmem:[#allocation2 + $0x10] sm:$0xff] %vm268, %v484
        $region48: #{tpu_custom_call.1} parent=31 // pred_fallthru
          _
        %p494 = scmp.gt.s32.totalorder %s24, 0
        %p495 = scmp.lt.s32.totalorder %s24, 1
        %p496 = pnand %p494, %p495
        %p497 = pneg %p496
        // Predicated region
        $region49: #{tpu_custom_call.1} parent=31 // pred_check
          _
        $region50: #{tpu_custom_call.1} parent=31 // pred_check_branch
          %499 = sbr.rel (%p496) target = $region52
        $region51: #{tpu_custom_call.1} parent=31 // pred_region
          %v500 = vld [vmem:[#allocation2] sm:$0xff]
          %v501 = vld [vmem:[#allocation2 + $0x8] sm:$0xff]
          %v502 = vld [vmem:[#allocation2 + $0x10] sm:$0xff]
          %v503 = vadd.f32 %v500, %v474
          %v504 = vadd.f32 %v501, %v479
          %v505 = vadd.f32 %v502, %v484
          %506 = vst.msk [vmem:[#allocation2] sm:$0xff] %vm268, %v503
          %507 = vst.msk [vmem:[#allocation2 + $0x8] sm:$0xff] %vm268, %v504
          %508 = vst.msk [vmem:[#allocation2 + $0x10] sm:$0xff] %vm268, %v505
        $region52: #{tpu_custom_call.1} parent=31 // pred_fallthru
          _
        %p509 = scmp.eq.s32.totalorder %s24, 1
        // Predicated region
        $region53: #{tpu_custom_call.1} parent=31 // pred_check
          %p510 = pneg %p509
        $region54: #{tpu_custom_call.1} parent=31 // pred_check_branch
          %512 = sbr.rel (%p510) target = $region56
        $region55: #{tpu_custom_call.1} parent=31 // pred_region
          %v513 = vld [vmem:[#allocation2] sm:$0xff]
          %v514 = vld [vmem:[#allocation2 + $0x8] sm:$0xff]
          %v515 = vld [vmem:[#allocation2 + $0x10] sm:$0xff]
          %v516 = vadd.f32 %v513, %v474
          %v517 = vadd.f32 %v514, %v479
          %v518 = vadd.f32 %v515, %v484
          %519 = vst.msk [vmem:[#allocation9] sm:$0xff] %vm268, %v516
          %520 = vst.msk [vmem:[#allocation9 + $0x8] sm:$0xff] %vm268, %v517
          %521 = vst.msk [vmem:[#allocation9 + $0x10] sm:$0xff] %vm268, %v518
        $region56: #{tpu_custom_call.1} parent=31 // pred_fallthru
          _
        // Predicated region
        $region57: #{tpu_custom_call.1} parent=31 // pred_check
          %p522 = pneg %p127
        $region58: #{tpu_custom_call.1} parent=31 // pred_check_branch
          %524 = sbr.rel (%p522) target = $region60
        $region59: #{tpu_custom_call.1} parent=31 // pred_region
          %s525 = smul.u32 3, %s23
          %s527 = ssub.s32 384, 384
          %528 = vsyncadd [#allocation5], %s527
          %s529 = smul.addr %s525, 128
          %s530 = scalar_lea.hbm %s3, %s529
          %s531 = sshll.u32 [#allocation9], 4
          %s532 = int_to_ptr.vmem [resolvable:$true] %s531
          %537 = dma.vmem_to_hbm [thread:$0]  %s532, 384, %s530, [#allocation5], 128, 128, 8
        $region60: #{tpu_custom_call.1} parent=31 // pred_fallthru
          _
        // Predicated region
        $region61: #{tpu_custom_call.1} parent=31 // pred_check
          %p538 = pneg %p127
        $region62: #{tpu_custom_call.1} parent=31 // pred_check_branch
          %540 = sbr.rel (%p538) target = $region64
        $region63: #{tpu_custom_call.1} parent=31 // pred_region
          %541 = dma.done [#allocation5], 384
        $region64: #{tpu_custom_call.1} parent=31 // pred_fallthru
          _
      $region32: #{tpu_custom_call.1} parent=5 // pred_fallthru
        _
      %p542 = scmp.le.s32.totalorder 2, %s14
      // Predicated region
      $region65: #{tpu_custom_call.1} parent=5 // pred_check
        %p543 = pneg %p542
      $region66: #{tpu_custom_call.1} parent=5 // pred_check_branch
        %545 = sbr.rel (%p543) target = $region68
      $region67: #{tpu_custom_call.1} parent=5 // pred_region
        %s546 = ssub.s32 %s14, 2
      $region68: #{tpu_custom_call.1} parent=5 // pred_fallthru
        _
    $region6: #{tpu_custom_call.1} parent=1 // loop_footer
      %s18 = sadd.s32 1, %s14
    $region7: #{tpu_custom_call.1} parent=1 // loop_footer_branch
      %13 = sbr.rel target = $region3
    $region8: #{tpu_custom_call.1} parent=1 // loop_exit
      _
    %547 = vsyncpa [#allocation4], 1
    %s548 = scalar_lea.sflag [#allocation4], 1
    %549 = vsyncpa %s548, 1
    %550 = vsyncpa [#allocation7], 1
    %s551 = scalar_lea.sflag [#allocation7], 1
    %552 = vsyncpa %s551, 1
    %553 = vsyncpa [#allocation5], 1
    %s554 = scalar_lea.sflag [#allocation5], 1
    %555 = vsyncpa %s554, 1

</llo_original>
